<compile_context>
chip_gen: v7x
topology: tpu7x:2x2x1
jax: 0.10.0
libtpu: 0.0.40
codegen_flags: <defaults>
</compile_context>

<pallas_src>
import jax
import jax.numpy as jnp
from jax.experimental import pallas as pl
from jax.experimental.pallas import tpu as pltpu


def _round_up(n, m):
    return ((n + m - 1) // m) * m


def _spatial_embedding_kernel(x_ref, v_ref, c_ref, o_ref):
    # x_ref: (TM, C) raw input rows; only the last channel is used.
    # v_ref: (1, D)  fused weight  = w1_row @ W2^T
    # c_ref: (1, D)  fused bias    = b1_row @ W2^T + b2
    # o_ref: (TM, D)
    C = x_ref.shape[1]
    x_last = x_ref[:, C - 1:C].astype(jnp.float32)          # (TM, 1)
    o_ref[...] = (x_last * v_ref[...] + c_ref[...]).astype(o_ref.dtype)


def spatial_embedding(x, w1, b1, w2, b2, *, block_rows=None,
                      out_dtype=jnp.float32):
    """Forward pass of SpatialEmbedding.

    x : (B, L, C) float  -- only x[:, :, -1] is used (as in the PyTorch module)
    w1: (D, 1), b1: (D,)  parameters of nn.Linear(1, D)
    w2: (D, D), b2: (D,)  parameters of nn.Linear(D, D)
    returns (B, L, D) in `out_dtype`
    """
    B, L, C = x.shape
    D = w1.shape[0]
    rows = B * L

    # Fused parameters (exact algebraic collapse of the two Linear layers).
    w1_row = w1.reshape(1, D).astype(jnp.float32)            # == w1.T
    b1_row = b1.reshape(1, D).astype(jnp.float32)
    w2t = jnp.transpose(w2).astype(jnp.float32)              # W2^T
    v = w1_row @ w2t                                         # (1, D)
    c = b1_row @ w2t + b2.reshape(1, D).astype(jnp.float32)  # (1, D)

    # Row tile: fat (amortizes per-step pipeline overhead, ~85% of HBM
    # roofline at >=512-1024 wide tiles). VMEM stays tiny:
    # 1024x128xf32 output tile = 512 KiB, x2 double-buffering ~= 1 MiB.
    if block_rows is None:
        tm = min(1024, _round_up(rows, 8))
        # On multi-TC chips (v7x) make sure every core gets >= 1 block when
        # the problem is big enough; never split on single-TC chips.
        n_cores = getattr(jax.devices()[0], "num_cores", 1) or 1
        if n_cores > 1 and rows >= n_cores * 8 and pl.cdiv(rows, tm) < n_cores:
            tm = _round_up(pl.cdiv(rows, n_cores), 8)
    else:
        tm = _round_up(block_rows, 8)
    tm = max(8, min(tm, _round_up(rows, 8)))
    grid = (pl.cdiv(rows, tm),)

    # Free metadata reshape; no copy, no slice, no pad.
    x_rows = x.reshape(rows, C)

    out = pl.pallas_call(
        _spatial_embedding_kernel,
        out_shape=jax.ShapeDtypeStruct((rows, D), out_dtype),
        grid_spec=pltpu.PrefetchScalarGridSpec(
            num_scalar_prefetch=0,
            grid=grid,
            in_specs=[
                pl.BlockSpec((tm, C), lambda i: (i, 0)),   # row tile of x
                pl.BlockSpec((1, D), lambda i: (0, 0)),    # fused weight (resident)
                pl.BlockSpec((1, D), lambda i: (0, 0)),    # fused bias  (resident)
            ],
            out_specs=pl.BlockSpec((tm, D), lambda i: (i, 0)),
        ),
        compiler_params=pltpu.CompilerParams(
            dimension_semantics=("parallel",)),
    )(x_rows, v, c)

    return out.reshape(B, L, D)


if __name__ == "__main__":
    key = jax.random.PRNGKey(0)
    kx, kw1, kb1, kw2, kb2 = jax.random.split(key, 5)

    # small shapes consistent with the module's forward:
    # x: (batch=2, seq=16, channels=4); d_model=128 (lane-dense output slab)
    B, L, C, D = 2, 16, 4, 128
    x = jax.random.normal(kx, (B, L, C), dtype=jnp.float32)
    w1 = jax.random.normal(kw1, (D, 1), dtype=jnp.float32)
    b1 = jax.random.normal(kb1, (D,), dtype=jnp.float32)
    w2 = jax.random.normal(kw2, (D, D), dtype=jnp.float32) / jnp.sqrt(D)
    b2 = jax.random.normal(kb2, (D,), dtype=jnp.float32)

    out = spatial_embedding(x, w1, b1, w2, b2)
    out = jax.block_until_ready(out)

    # pure-JAX reference mirroring the PyTorch forward
    x_last = x[:, :, -1][..., None]            # (B, L, 1)
    label = x_last @ w1.T + b1                 # nn.Linear(1, D)
    ref = label @ w2.T + b2                    # nn.Linear(D, D)

    assert out.shape == (B, L, D)
    assert bool(jnp.all(jnp.isfinite(out)))
    assert bool(jnp.allclose(out, ref, atol=2e-3, rtol=2e-3))
    print("KERNEL_OK")
</pallas_src>

<mosaic_0001>
module attributes {stable_mosaic.version = 11 : i64} {
  func.func @_spatial_embedding_kernel(%arg0: i32, %arg1: memref<32x4xf32, #tpu.memory_space<vmem>>, %arg2: memref<1x128xf32, #tpu.memory_space<vmem>>, %arg3: memref<1x128xf32, #tpu.memory_space<vmem>>, %arg4: memref<32x128xf32, #tpu.memory_space<vmem>>) attributes {dimension_semantics = [#tpu.dimension_semantics<parallel>], iteration_bounds = array<i64: 1>, scalar_prefetch = 0 : i64, scratch_operands = 0 : i64, tpu.core_type = #tpu.core_type<tc>, window_params = [{transform_indices = @transform_0, window_bounds = array<i64: 32, 4>}, {pipeline_mode = #tpu.pipeline_mode<synchronous>, transform_indices = @transform_1, window_bounds = array<i64: 1, 128>}, {pipeline_mode = #tpu.pipeline_mode<synchronous>, transform_indices = @transform_2, window_bounds = array<i64: 1, 128>}, {transform_indices = @transform_3, window_bounds = array<i64: 32, 128>}]} {
    %c0 = arith.constant 0 : index
    %c3 = arith.constant 3 : index
    %0 = vector.load %arg1[%c0, %c3] : memref<32x4xf32, #tpu.memory_space<vmem>>, vector<32x1xf32>
    %c0_0 = arith.constant 0 : index
    %c0_1 = arith.constant 0 : index
    %1 = vector.load %arg2[%c0_0, %c0_1] : memref<1x128xf32, #tpu.memory_space<vmem>>, vector<1x128xf32>
    %2 = vector.broadcast %0 : vector<32x1xf32> to vector<32x128xf32>
    %3 = vector.broadcast %1 : vector<1x128xf32> to vector<32x128xf32>
    %4 = arith.mulf %2, %3 : vector<32x128xf32>
    %c0_2 = arith.constant 0 : index
    %c0_3 = arith.constant 0 : index
    %5 = vector.load %arg3[%c0_2, %c0_3] : memref<1x128xf32, #tpu.memory_space<vmem>>, vector<1x128xf32>
    %6 = vector.broadcast %5 : vector<1x128xf32> to vector<32x128xf32>
    %7 = arith.addf %4, %6 : vector<32x128xf32>
    %c0_4 = arith.constant 0 : index
    %c0_5 = arith.constant 0 : index
    %8 = vector.load %arg4[%c0_4, %c0_5] : memref<32x128xf32, #tpu.memory_space<vmem>>, vector<32x128xf32>
    tpu.vector_store %arg4[%c0_4, %c0_5], %7 {strides = array<i32>} : memref<32x128xf32, #tpu.memory_space<vmem>>, vector<32x128xf32>,
    return
  }
  func.func @transform_0(%arg0: i32) -> (i32, i32) {
    %c0_i32 = arith.constant 0 : i32
    %c0_i32_0 = arith.constant 0 : i32
    return %arg0, %c0_i32 : i32, i32
  }
  func.func @transform_1(%arg0: i32) -> (i32, i32) {
    %c0_i32 = arith.constant 0 : i32
    %c0_i32_0 = arith.constant 0 : i32
    %c0_i32_1 = arith.constant 0 : i32
    return %c0_i32, %c0_i32_0 : i32, i32
  }
  func.func @transform_2(%arg0: i32) -> (i32, i32) {
    %c0_i32 = arith.constant 0 : i32
    %c0_i32_0 = arith.constant 0 : i32
    %c0_i32_1 = arith.constant 0 : i32
    return %c0_i32, %c0_i32_0 : i32, i32
  }
  func.func @transform_3(%arg0: i32) -> (i32, i32) {
    %c0_i32 = arith.constant 0 : i32
    %c0_i32_0 = arith.constant 0 : i32
    return %arg0, %c0_i32 : i32, i32
  }
}

</mosaic_0001>

<llo_original>
// kernel: tpu_custom_call.1
$region0: #{tpu_custom_call.1}
  #allocation0 [shape = 'u32[]', space=smem, size = 0x4, offset = 0x4, fixed_abs, tag = 'smem constant byte address 0x4 - core index']
  #allocation1 [shape = 'u32[144,128]{1,0:T(1,128)}', space=vmem, size = 0x12000, scoped, tag = 'internal scratch']
  %s0 = inlined_call_operand.vmem [shape: f32[32,4], index: 0, kind: input, shape index: {}]
  %s1 = inlined_call_operand.vmem [shape: f32[1,128], index: 1, kind: input, shape index: {}]
  %s2 = inlined_call_operand.vmem [shape: f32[1,128], index: 2, kind: input, shape index: {}]
  %s3 = inlined_call_operand.hbm [shape: f32[32,128], index: 3, kind: output, shape index: {}]
  %s4 = sld [smem:[#allocation0]]
  $region22: #{tpu_custom_call.1} parent=0
    _
  %s6 = ssub.s32 1, %s4
  %s7 = scalar_select 0, %s6, %s4
  $region1: #{tpu_custom_call.1} parent=0
    #allocation2 [shape = 'u8[16384]{0}', space=vmem, size = 0x4000, scoped, tag = 'output window, operand 0, single buffered']
    #allocation3 [shape = 's32[1]{0}', space=sflag, size = 0x4, scoped, tag = 'scoped memory for tpu_custom_call.1']
    %8 = vsyncpa [#allocation3], 0
    // Predicated region
    $region2: #{tpu_custom_call.1} parent=1 // pred_check
      _
    $region3: #{tpu_custom_call.1} parent=1 // pred_check_branch
      %10 = sbr.rel (0) target = $region5
    $region4: #{tpu_custom_call.1} parent=1 // pred_region
      _
    $region5: #{tpu_custom_call.1} parent=1 // pred_fallthru
      _
    // Predicated region
    $region6: #{tpu_custom_call.1} parent=1 // pred_check
      _
    $region7: #{tpu_custom_call.1} parent=1 // pred_check_branch
      %12 = sbr.rel (0) target = $region9
    $region8: #{tpu_custom_call.1} parent=1 // pred_region
      _
    $region9: #{tpu_custom_call.1} parent=1 // pred_fallthru
      _
    // Predicated region
    $region10: #{tpu_custom_call.1} parent=1 // pred_check
      _
    $region11: #{tpu_custom_call.1} parent=1 // pred_check_branch
      %14 = sbr.rel (0) target = $region13
    $region12: #{tpu_custom_call.1} parent=1 // pred_region
      _
    $region13: #{tpu_custom_call.1} parent=1 // pred_fallthru
      _
    %v15 = vld [vmem:[%s0] sm:$0xff]
    %v16 = vld [vmem:[%s0 + $0x8] sm:$0xff]
    %v17 = vld [vmem:[%s0 + $0x10] sm:$0xff]
    %v18 = vld [vmem:[%s0 + $0x18] sm:$0xff]
    %v19 = vld [vmem:[%s1] sm:$0x1]
    %21 = vset.pattern.permute.xlu0 3
    %22 = vperm.xlu0 %21, %v15
    %v23 = vpop.permute.xlu0 %22
    %26 = vset.pattern.permute.xlu0 3
    %27 = vperm.xlu0 %26, %v16
    %v28 = vpop.permute.xlu0 %27
    %31 = vset.pattern.permute.xlu0 3
    %32 = vperm.xlu0 %31, %v17
    %v33 = vpop.permute.xlu0 %32
    %36 = vset.pattern.permute.xlu0 3
    %37 = vperm.xlu0 %36, %v18
    %v38 = vpop.permute.xlu0 %37
    %v41 = vlaneseq
    %v42 = vshrl.u32 %v41, 7
    %v43 = vsub.s32 0, %v42
    %v44 = vrot.slane %v19, %v43
    %v46 = vmul.f32 %v23, %v44
    %v47 = vmul.f32 %v28, %v44
    %v48 = vmul.f32 %v33, %v44
    %v49 = vmul.f32 %v38, %v44
    %v50 = vld [vmem:[%s2] sm:$0x1]
    %v52 = vlaneseq
    %v53 = vshrl.u32 %v52, 7
    %v54 = vsub.s32 0, %v53
    %v55 = vrot.slane %v50, %v54
    %v57 = vadd.f32 %v46, %v55
    %v58 = vadd.f32 %v47, %v55
    %v59 = vadd.f32 %v48, %v55
    %v60 = vadd.f32 %v49, %v55
    %61 = vst [vmem:[#allocation2] sm:$0xff] %v57
    %62 = vst [vmem:[#allocation2 + $0x8] sm:$0xff] %v58
    %63 = vst [vmem:[#allocation2 + $0x10] sm:$0xff] %v59
    %64 = vst [vmem:[#allocation2 + $0x18] sm:$0xff] %v60
    // Predicated region
    $region14: #{tpu_custom_call.1} parent=1 // pred_check
      _
    $region15: #{tpu_custom_call.1} parent=1 // pred_check_branch
      %66 = sbr.rel (0) target = $region17
    $region16: #{tpu_custom_call.1} parent=1 // pred_region
      %s68 = ssub.s32 512, 512
      %69 = vsyncadd [#allocation3], %s68
      %s70 = sshll.u32 [#allocation2], 4
      %s71 = int_to_ptr.vmem [resolvable:$true] %s70
      %76 = dma.vmem_to_hbm [thread:$0]  %s71, 512, %s3, [#allocation3], 128, 128, 8
    $region17: #{tpu_custom_call.1} parent=1 // pred_fallthru
      _
    // Predicated region
    $region18: #{tpu_custom_call.1} parent=1 // pred_check
      _
    $region19: #{tpu_custom_call.1} parent=1 // pred_check_branch
      %78 = sbr.rel (0) target = $region21
    $region20: #{tpu_custom_call.1} parent=1 // pred_region
      %79 = dma.done [#allocation3], 512
    $region21: #{tpu_custom_call.1} parent=1 // pred_fallthru
      _
    %80 = vsyncpa [#allocation3], 1

</llo_original>
